<compile_context>
chip_gen: v6e
topology: v6e:2x2x1
jax: 0.10.0
libtpu: 0.0.40
codegen_flags: <defaults>
</compile_context>

<pallas_src>
import functools

import jax
import jax.numpy as jnp
from jax.experimental import pallas as pl
from jax.experimental.pallas import tpu as pltpu

NUM_CLASSES = 3
LABEL_SMOOTHING = 0.1
DICE_SMOOTH = 1e-6
DICE_WEIGHT = 2.0
DEPTH_WEIGHT = 0.1
W_CLASS0 = 1.0            # CrossEntropy class weights [1, 5, 5] from the module __init__
W_OTHER = 5.0
W_SUM = W_CLASS0 + (NUM_CLASSES - 1) * W_OTHER

# Accumulator slots (leading dim of the single resident accumulator block).
_INTER0 = 0               # 0..2 : dice intersection per class
_UNION0 = 3               # 3..5 : dice union (probs + onehot) per class
_CE = 6                   # (1-LS)*w_y*(-logp_y) + (LS/C)*sum_c w_c*(-logp_c)
_WSUM = 7                 # sum_n w_{y_n}
_L1 = 8                   # sum_n |depth_pred - depth_true|
ACC_SLOTS = 9


def _device_kind():
    try:
        return jax.devices()[0].device_kind.lower()
    except Exception:
        return ""


_KIND = _device_kind()
# v7x has 2 TensorCores per chip; on v5e/v6e a slab split is pure overhead.
NUM_SLABS = 2 if "v7" in _KIND else 1
# Rows (of 128 lanes) per grid step: ~2.6 MB/step on v5e, ~5.2 MB/step on v6e/v7x.
TS_MAX = 1024 if "v5" in _KIND else 2048
VMEM_LIMIT = 48 * 1024 * 1024      # below v7x's 64 MiB physical VMEM


def combined_loss_kernel(logits_ref, tgt_ref, dp_ref, dt_ref, acc_ref,
                         *, hw, ts, acc_r, tiles_per_slab, needs_mask):
    """One (TS, 128) spatial tile of one batch element -> partial reductions.

    Kernel views: logits (C, TS, 128), target (TS, 128) int, depth_* (TS, 128).
    acc_ref (ACC_SLOTS, acc_r, 128) stays resident in VMEM across the (batch, tile)
    grid axes (same output block for every step of a slab).
    """
    g = pl.program_id(0)      # slab (split across TensorCores on v7x)
    b = pl.program_id(1)      # batch (reduction)
    i = pl.program_id(2)      # row tile within this slab (reduction)

    @pl.when((b == 0) & (i == 0))
    def _init():
        acc_ref[...] = jnp.zeros_like(acc_ref)

    def reduce_rows(x):
        # (TS, 128) -> (acc_r, 128): free-view reshape + vreg-wise adds when TS % 8 == 0.
        if acc_r == ts:
            return x
        return x.reshape(ts // 8, 8, 128).sum(axis=0)

    def contribute(masked):
        l0 = logits_ref[0].astype(jnp.float32)
        l1c = logits_ref[1].astype(jnp.float32)
        l2 = logits_ref[2].astype(jnp.float32)
        tgt = tgt_ref[...]
        dp = dp_ref[...].astype(jnp.float32)
        dt = dt_ref[...].astype(jnp.float32)

        # softmax over the (unrolled) class axis; exp computed once, probs via one divide
        m = jnp.maximum(jnp.maximum(l0, l1c), l2)
        z0, z1, z2 = l0 - m, l1c - m, l2 - m
        e0, e1, e2 = jnp.exp(z0), jnp.exp(z1), jnp.exp(z2)
        s = e0 + e1 + e2
        lse = jnp.log(s)
        inv_s = 1.0 / s
        p0, p1, p2 = e0 * inv_s, e1 * inv_s, e2 * inv_s

        oh0 = (tgt == 0).astype(jnp.float32)
        oh1 = (tgt == 1).astype(jnp.float32)
        oh2 = (tgt == 2).astype(jnp.float32)
        w_y = jnp.where(tgt == 0, W_CLASS0, W_OTHER)

        # -log p_y = lse - z_y ;  sum_c w_c*(-log p_c) = W_SUM*lse - sum_c w_c*z_c
        z_y = oh0 * z0 + oh1 * z1 + oh2 * z2
        nll_pp = w_y * (lse - z_y)
        smooth_pp = W_SUM * lse - (W_CLASS0 * z0 + W_OTHER * (z1 + z2))
        ce_pp = (1.0 - LABEL_SMOOTHING) * nll_pp \
            + (LABEL_SMOOTHING / NUM_CLASSES) * smooth_pp
        l1_pp = jnp.abs(dp - dt)          # padded lanes are |0 - 0| = 0

        if masked:
            row = jax.lax.broadcasted_iota(jnp.int32, (ts, 128), 0)
            lane = jax.lax.broadcasted_iota(jnp.int32, (ts, 128), 1)
            row0 = (g * tiles_per_slab + i) * ts
            maskf = (((row0 + row) * 128 + lane) < hw).astype(jnp.float32)
            oh0, oh1, oh2 = oh0 * maskf, oh1 * maskf, oh2 * maskf
            pm0, pm1, pm2 = p0 * maskf, p1 * maskf, p2 * maskf
            ce_pp = ce_pp * maskf
            w_y = w_y * maskf
        else:
            pm0, pm1, pm2 = p0, p1, p2

        acc_ref[_INTER0 + 0] += reduce_rows(p0 * oh0)
        acc_ref[_INTER0 + 1] += reduce_rows(p1 * oh1)
        acc_ref[_INTER0 + 2] += reduce_rows(p2 * oh2)
        acc_ref[_UNION0 + 0] += reduce_rows(pm0 + oh0)
        acc_ref[_UNION0 + 1] += reduce_rows(pm1 + oh1)
        acc_ref[_UNION0 + 2] += reduce_rows(pm2 + oh2)
        acc_ref[_CE] += reduce_rows(ce_pp)
        acc_ref[_WSUM] += reduce_rows(w_y)
        acc_ref[_L1] += reduce_rows(l1_pp)

    if needs_mask:
        # Only tiles overlapping the ragged tail pay for the mask.
        tile_has_pad = ((g * tiles_per_slab + i) * ts + ts) * 128 > hw

        @pl.when(tile_has_pad)
        def _masked():
            contribute(True)

        @pl.when(jnp.logical_not(tile_has_pad))
        def _unmasked():
            contribute(False)
    else:
        contribute(False)


@jax.jit
def combined_loss(logits, target, depth_pred, depth_true):
    """logits: (B, C, H, W); target: (B, H, W) int; depth_*: (B, H, W)."""
    B, C, H, W = logits.shape
    assert C == NUM_CLASSES
    HW = H * W
    N = B * HW

    # --- tiling of the flattened spatial axis into (rows, 128) lanes ---
    R = pl.cdiv(HW, 128)                       # rows of 128 lanes per image
    num_slabs = NUM_SLABS if R >= 8 * NUM_SLABS else 1
    if R < 8:
        num_slabs, nt, ts = 1, 1, R            # full-dim block (no sublane padding)
    else:
        ts = min(TS_MAX, pl.cdiv(R, num_slabs))
        ts = pl.cdiv(ts, 8) * 8
        nt = num_slabs * pl.cdiv(R, num_slabs * ts)
        ts = pl.cdiv(pl.cdiv(R, nt), 8) * 8    # rebalance (multiple of 8, <= TS_MAX)
    rp = nt * ts
    tiles_per_slab = nt // num_slabs
    acc_r = 8 if ts % 8 == 0 else ts
    pad = rp * 128 - HW

    # --- free reshapes to the dense layout (pad only when H*W is ragged) ---
    logits3 = logits.reshape(B, C, HW)
    tgt3 = target.reshape(B, HW)               # native int dtype (no cast pass)
    dp3 = depth_pred.reshape(B, HW)
    dt3 = depth_true.reshape(B, HW)
    if pad:
        # TODO(synk): handle the ragged tail fully in-kernel (pl.ANY + manual DMA) to
        # drop this host-side pad pass; it only triggers when H*W is not 128-aligned.
        logits3 = jnp.pad(logits3, ((0, 0), (0, 0), (0, pad)))
        tgt3 = jnp.pad(tgt3, ((0, 0), (0, pad)))
        dp3 = jnp.pad(dp3, ((0, 0), (0, pad)))
        dt3 = jnp.pad(dt3, ((0, 0), (0, pad)))
    logits4 = logits3.reshape(B, NUM_CLASSES, rp, 128)
    tgt4 = tgt3.reshape(B, rp, 128)
    dp4 = dp3.reshape(B, rp, 128)
    dt4 = dt3.reshape(B, rp, 128)

    kernel = functools.partial(
        combined_loss_kernel, hw=HW, ts=ts, acc_r=acc_r,
        tiles_per_slab=tiles_per_slab, needs_mask=(pad > 0))

    def idx4(g, b, i):
        return (b, 0, g * tiles_per_slab + i, 0)

    def idx3(g, b, i):
        return (b, g * tiles_per_slab + i, 0)

    acc = pl.pallas_call(
        kernel,
        out_shape=jax.ShapeDtypeStruct((num_slabs, ACC_SLOTS, acc_r, 128), jnp.float32),
        grid=(num_slabs, B, tiles_per_slab),
        in_specs=[
            pl.BlockSpec((None, NUM_CLASSES, ts, 128), idx4),   # logits
            pl.BlockSpec((None, ts, 128), idx3),                # target (int)
            pl.BlockSpec((None, ts, 128), idx3),                # depth_pred
            pl.BlockSpec((None, ts, 128), idx3),                # depth_true
        ],
        out_specs=pl.BlockSpec((None, ACC_SLOTS, acc_r, 128),
                               lambda g, b, i: (g, 0, 0, 0)),
        compiler_params=pltpu.CompilerParams(
            # TODO(synk): on v7x, verify in a trace that the slab axis lands on both
            # TensorCores; switch to pltpu.CORE_PARALLEL / pl.core_map if it does not.
            dimension_semantics=("parallel", "arbitrary", "arbitrary"),
            vmem_limit_bytes=VMEM_LIMIT),
    )(logits4, tgt4, dp4, dt4)

    # --- tiny final combine (glue): sum slabs + rows + lanes ---
    red = acc.sum(axis=(0, 2, 3))                       # (ACC_SLOTS,)
    inter = red[_INTER0:_INTER0 + NUM_CLASSES]
    union = red[_UNION0:_UNION0 + NUM_CLASSES]
    ce = red[_CE] / red[_WSUM]                          # PyTorch weighted-mean CE
    dice = (2.0 * inter + DICE_SMOOTH) / (union + DICE_SMOOTH)
    dice_loss = 1.0 - jnp.mean(dice)
    l1 = red[_L1] / N
    return ce + DICE_WEIGHT * dice_loss + DEPTH_WEIGHT * l1


def reference_loss(logits, target, depth_pred, depth_true):
    """Pure-JAX reference reproducing the PyTorch module semantics."""
    B, C, H, W = logits.shape
    w = jnp.array([1.0, 5.0, 5.0], jnp.float32)
    logp = jax.nn.log_softmax(logits.astype(jnp.float32), axis=1)
    probs = jnp.exp(logp)
    onehot = jnp.moveaxis(jax.nn.one_hot(target, C, dtype=jnp.float32), -1, 1)  # (B,C,H,W)

    w_y = w[target]                                            # (B,H,W)
    nll = jnp.sum(w_y * (-(logp * onehot).sum(axis=1))) / jnp.sum(w_y)
    smooth = jnp.sum(-(logp * w.reshape(1, C, 1, 1))) / jnp.sum(w_y)
    ce = (1 - LABEL_SMOOTHING) * nll + (LABEL_SMOOTHING / C) * smooth

    inter = (probs * onehot).sum(axis=(0, 2, 3))
    union = probs.sum(axis=(0, 2, 3)) + onehot.sum(axis=(0, 2, 3))
    dice_loss = 1.0 - jnp.mean((2.0 * inter + DICE_SMOOTH) / (union + DICE_SMOOTH))

    l1 = jnp.mean(jnp.abs(depth_pred - depth_true))
    return ce + DICE_WEIGHT * dice_loss + DEPTH_WEIGHT * l1


if __name__ == "__main__":
    key = jax.random.PRNGKey(0)
    k1, k2, k3, k4 = jax.random.split(key, 4)

    # primary small case: B=2, C=3, H=W=16 (spatial axis is a clean multiple of 128)
    B, C, H, W = 2, NUM_CLASSES, 16, 16
    logits = jax.random.normal(k1, (B, C, H, W), jnp.float32)
    target = jax.random.randint(k2, (B, H, W), 0, C, jnp.int32)
    depth_pred = jax.random.uniform(k3, (B, H, W), jnp.float32)
    depth_true = jax.random.uniform(k4, (B, H, W), jnp.float32)

    loss = jax.block_until_ready(combined_loss(logits, target, depth_pred, depth_true))
    ref = reference_loss(logits, target, depth_pred, depth_true)
    assert jnp.allclose(loss, ref, rtol=1e-4, atol=1e-4), (loss, ref)

    # ragged case: H*W not a multiple of 128 -> exercises the in-kernel padding mask
    H2, W2 = 10, 12
    logits2 = jax.random.normal(k1, (B, C, H2, W2), jnp.float32)
    target2 = jax.random.randint(k2, (B, H2, W2), 0, C, jnp.int32)
    dp2 = jax.random.uniform(k3, (B, H2, W2), jnp.float32)
    dt2 = jax.random.uniform(k4, (B, H2, W2), jnp.float32)
    loss2 = jax.block_until_ready(combined_loss(logits2, target2, dp2, dt2))
    ref2 = reference_loss(logits2, target2, dp2, dt2)
    assert jnp.allclose(loss2, ref2, rtol=1e-4, atol=1e-4), (loss2, ref2)

    print("KERNEL_OK")
</pallas_src>

<mosaic_0001>
module attributes {stable_mosaic.version = 11 : i64} {
  func.func @combined_loss_kernel(%arg0: i32, %arg1: i32, %arg2: i32, %arg3: memref<1x3x2x128xf32, #tpu.memory_space<vmem>>, %arg4: memref<1x2x128xi32, #tpu.memory_space<vmem>>, %arg5: memref<1x2x128xf32, #tpu.memory_space<vmem>>, %arg6: memref<1x2x128xf32, #tpu.memory_space<vmem>>, %arg7: memref<1x9x2x128xf32, #tpu.memory_space<vmem>>) attributes {dimension_semantics = [#tpu.dimension_semantics<parallel>, #tpu.dimension_semantics<arbitrary>, #tpu.dimension_semantics<arbitrary>], iteration_bounds = array<i64: 1, 2, 1>, scalar_prefetch = 0 : i64, scratch_operands = 0 : i64, tpu.core_type = #tpu.core_type<tc>, window_params = [{transform_indices = @transform_0, window_bounds = array<i64: 1, 3, 2, 128>}, {transform_indices = @transform_1, window_bounds = array<i64: 1, 2, 128>}, {transform_indices = @transform_2, window_bounds = array<i64: 1, 2, 128>}, {transform_indices = @transform_3, window_bounds = array<i64: 1, 2, 128>}, {transform_indices = @transform_4, window_bounds = array<i64: 1, 9, 2, 128>}]} {
    %c0_i32 = arith.constant 0 : i32
    %0 = arith.cmpi eq, %arg1, %c0_i32 : i32
    %c0_i32_0 = arith.constant 0 : i32
    %1 = arith.cmpi eq, %arg2, %c0_i32_0 : i32
    %2 = arith.andi %0, %1 : i1
    %3 = arith.extui %2 : i1 to i32
    %c0_i32_1 = arith.constant 0 : i32
    %4 = arith.cmpi ne, %3, %c0_i32_1 : i32
    scf.if %4 {
      %cst_95 = arith.constant 0.000000e+00 : f32
      %133 = vector.broadcast %cst_95 : f32 to vector<9x2x128xf32>
      %c0_96 = arith.constant 0 : index
      %c0_97 = arith.constant 0 : index
      %c0_98 = arith.constant 0 : index
      %c0_99 = arith.constant 0 : index
      %134 = vector.load %arg7[%c0_96, %c0_97, %c0_98, %c0_99] : memref<1x9x2x128xf32, #tpu.memory_space<vmem>>, vector<1x9x2x128xf32>
      %135 = vector.shape_cast %134 : vector<1x9x2x128xf32> to vector<9x2x128xf32>
      %136 = vector.shape_cast %133 : vector<9x2x128xf32> to vector<1x9x2x128xf32>
      tpu.vector_store %arg7[%c0_96, %c0_97, %c0_98, %c0_99], %136 {strides = array<i32>} : memref<1x9x2x128xf32, #tpu.memory_space<vmem>>, vector<1x9x2x128xf32>,
    } else {
    }
    %c0 = arith.constant 0 : index
    %c0_2 = arith.constant 0 : index
    %c0_3 = arith.constant 0 : index
    %c0_4 = arith.constant 0 : index
    %5 = vector.load %arg3[%c0, %c0_2, %c0_3, %c0_4] : memref<1x3x2x128xf32, #tpu.memory_space<vmem>>, vector<1x1x2x128xf32>
    %6 = vector.shape_cast %5 : vector<1x1x2x128xf32> to vector<2x128xf32>
    %c0_5 = arith.constant 0 : index
    %c1 = arith.constant 1 : index
    %c0_6 = arith.constant 0 : index
    %c0_7 = arith.constant 0 : index
    %7 = vector.load %arg3[%c0_5, %c1, %c0_6, %c0_7] : memref<1x3x2x128xf32, #tpu.memory_space<vmem>>, vector<1x1x2x128xf32>
    %8 = vector.shape_cast %7 : vector<1x1x2x128xf32> to vector<2x128xf32>
    %c0_8 = arith.constant 0 : index
    %c2 = arith.constant 2 : index
    %c0_9 = arith.constant 0 : index
    %c0_10 = arith.constant 0 : index
    %9 = vector.load %arg3[%c0_8, %c2, %c0_9, %c0_10] : memref<1x3x2x128xf32, #tpu.memory_space<vmem>>, vector<1x1x2x128xf32>
    %10 = vector.shape_cast %9 : vector<1x1x2x128xf32> to vector<2x128xf32>
    %c0_11 = arith.constant 0 : index
    %c0_12 = arith.constant 0 : index
    %c0_13 = arith.constant 0 : index
    %11 = vector.load %arg4[%c0_11, %c0_12, %c0_13] : memref<1x2x128xi32, #tpu.memory_space<vmem>>, vector<1x2x128xi32>
    %12 = vector.shape_cast %11 : vector<1x2x128xi32> to vector<2x128xi32>
    %c0_14 = arith.constant 0 : index
    %c0_15 = arith.constant 0 : index
    %c0_16 = arith.constant 0 : index
    %13 = vector.load %arg5[%c0_14, %c0_15, %c0_16] : memref<1x2x128xf32, #tpu.memory_space<vmem>>, vector<1x2x128xf32>
    %14 = vector.shape_cast %13 : vector<1x2x128xf32> to vector<2x128xf32>
    %c0_17 = arith.constant 0 : index
    %c0_18 = arith.constant 0 : index
    %c0_19 = arith.constant 0 : index
    %15 = vector.load %arg6[%c0_17, %c0_18, %c0_19] : memref<1x2x128xf32, #tpu.memory_space<vmem>>, vector<1x2x128xf32>
    %16 = vector.shape_cast %15 : vector<1x2x128xf32> to vector<2x128xf32>
    %17 = arith.maximumf %6, %8 : vector<2x128xf32>
    %18 = arith.maximumf %17, %10 : vector<2x128xf32>
    %19 = arith.subf %6, %18 : vector<2x128xf32>
    %20 = arith.subf %8, %18 : vector<2x128xf32>
    %21 = arith.subf %10, %18 : vector<2x128xf32>
    %22 = math.exp %19 : vector<2x128xf32>
    %23 = math.exp %20 : vector<2x128xf32>
    %24 = math.exp %21 : vector<2x128xf32>
    %25 = arith.addf %22, %23 : vector<2x128xf32>
    %26 = arith.addf %25, %24 : vector<2x128xf32>
    %27 = math.log %26 : vector<2x128xf32>
    %cst = arith.constant 1.000000e+00 : f32
    %28 = vector.broadcast %cst : f32 to vector<2x128xf32>
    %29 = arith.divf %28, %26 : vector<2x128xf32>
    %30 = arith.mulf %22, %29 : vector<2x128xf32>
    %31 = arith.mulf %23, %29 : vector<2x128xf32>
    %32 = arith.mulf %24, %29 : vector<2x128xf32>
    %c0_i32_20 = arith.constant 0 : i32
    %33 = vector.broadcast %c0_i32_20 : i32 to vector<2x128xi32>
    %34 = arith.cmpi eq, %12, %33 : vector<2x128xi32>
    %35 = arith.extui %34 : vector<2x128xi1> to vector<2x128xi32>
    %36 = arith.sitofp %35 : vector<2x128xi32> to vector<2x128xf32>
    %c1_i32 = arith.constant 1 : i32
    %37 = vector.broadcast %c1_i32 : i32 to vector<2x128xi32>
    %38 = arith.cmpi eq, %12, %37 : vector<2x128xi32>
    %39 = arith.extui %38 : vector<2x128xi1> to vector<2x128xi32>
    %40 = arith.sitofp %39 : vector<2x128xi32> to vector<2x128xf32>
    %c2_i32 = arith.constant 2 : i32
    %41 = vector.broadcast %c2_i32 : i32 to vector<2x128xi32>
    %42 = arith.cmpi eq, %12, %41 : vector<2x128xi32>
    %43 = arith.extui %42 : vector<2x128xi1> to vector<2x128xi32>
    %44 = arith.sitofp %43 : vector<2x128xi32> to vector<2x128xf32>
    %c0_i32_21 = arith.constant 0 : i32
    %45 = vector.broadcast %c0_i32_21 : i32 to vector<2x128xi32>
    %46 = arith.cmpi eq, %12, %45 : vector<2x128xi32>
    %cst_22 = arith.constant 1.000000e+00 : f32
    %cst_23 = arith.constant 5.000000e+00 : f32
    %47 = vector.broadcast %cst_22 : f32 to vector<2x128xf32>
    %48 = vector.broadcast %cst_23 : f32 to vector<2x128xf32>
    %49 = arith.select %46, %47, %48 : vector<2x128xi1>, vector<2x128xf32>
    %50 = arith.mulf %36, %19 : vector<2x128xf32>
    %51 = arith.mulf %40, %20 : vector<2x128xf32>
    %52 = arith.addf %50, %51 : vector<2x128xf32>
    %53 = arith.mulf %44, %21 : vector<2x128xf32>
    %54 = arith.addf %52, %53 : vector<2x128xf32>
    %55 = arith.subf %27, %54 : vector<2x128xf32>
    %56 = arith.mulf %49, %55 : vector<2x128xf32>
    %cst_24 = arith.constant 1.100000e+01 : f32
    %57 = vector.broadcast %cst_24 : f32 to vector<2x128xf32>
    %58 = arith.mulf %57, %27 : vector<2x128xf32>
    %cst_25 = arith.constant 1.000000e+00 : f32
    %59 = vector.broadcast %cst_25 : f32 to vector<2x128xf32>
    %60 = arith.mulf %59, %19 : vector<2x128xf32>
    %61 = arith.addf %20, %21 : vector<2x128xf32>
    %cst_26 = arith.constant 5.000000e+00 : f32
    %62 = vector.broadcast %cst_26 : f32 to vector<2x128xf32>
    %63 = arith.mulf %62, %61 : vector<2x128xf32>
    %64 = arith.addf %60, %63 : vector<2x128xf32>
    %65 = arith.subf %58, %64 : vector<2x128xf32>
    %cst_27 = arith.constant 0.899999976 : f32
    %66 = vector.broadcast %cst_27 : f32 to vector<2x128xf32>
    %67 = arith.mulf %66, %56 : vector<2x128xf32>
    %cst_28 = arith.constant 0.0333333351 : f32
    %68 = vector.broadcast %cst_28 : f32 to vector<2x128xf32>
    %69 = arith.mulf %68, %65 : vector<2x128xf32>
    %70 = arith.addf %67, %69 : vector<2x128xf32>
    %71 = arith.subf %14, %16 : vector<2x128xf32>
    %72 = math.absf %71 : vector<2x128xf32>
    %c0_29 = arith.constant 0 : index
    %c0_30 = arith.constant 0 : index
    %c0_31 = arith.constant 0 : index
    %c0_32 = arith.constant 0 : index
    %73 = vector.load %arg7[%c0_29, %c0_30, %c0_31, %c0_32] : memref<1x9x2x128xf32, #tpu.memory_space<vmem>>, vector<1x1x2x128xf32>
    %74 = vector.shape_cast %73 : vector<1x1x2x128xf32> to vector<2x128xf32>
    %75 = arith.mulf %30, %36 : vector<2x128xf32>
    %76 = arith.addf %74, %75 : vector<2x128xf32>
    %c0_33 = arith.constant 0 : index
    %c0_34 = arith.constant 0 : index
    %c0_35 = arith.constant 0 : index
    %c0_36 = arith.constant 0 : index
    %77 = vector.load %arg7[%c0_33, %c0_34, %c0_35, %c0_36] : memref<1x9x2x128xf32, #tpu.memory_space<vmem>>, vector<1x1x2x128xf32>
    %78 = vector.shape_cast %77 : vector<1x1x2x128xf32> to vector<2x128xf32>
    %79 = vector.shape_cast %76 : vector<2x128xf32> to vector<1x1x2x128xf32>
    tpu.vector_store %arg7[%c0_33, %c0_34, %c0_35, %c0_36], %79 {strides = array<i32>} : memref<1x9x2x128xf32, #tpu.memory_space<vmem>>, vector<1x1x2x128xf32>,
    %c0_37 = arith.constant 0 : index
    %c1_38 = arith.constant 1 : index
    %c0_39 = arith.constant 0 : index
    %c0_40 = arith.constant 0 : index
    %80 = vector.load %arg7[%c0_37, %c1_38, %c0_39, %c0_40] : memref<1x9x2x128xf32, #tpu.memory_space<vmem>>, vector<1x1x2x128xf32>
    %81 = vector.shape_cast %80 : vector<1x1x2x128xf32> to vector<2x128xf32>
    %82 = arith.mulf %31, %40 : vector<2x128xf32>
    %83 = arith.addf %81, %82 : vector<2x128xf32>
    %c0_41 = arith.constant 0 : index
    %c1_42 = arith.constant 1 : index
    %c0_43 = arith.constant 0 : index
    %c0_44 = arith.constant 0 : index
    %84 = vector.load %arg7[%c0_41, %c1_42, %c0_43, %c0_44] : memref<1x9x2x128xf32, #tpu.memory_space<vmem>>, vector<1x1x2x128xf32>
    %85 = vector.shape_cast %84 : vector<1x1x2x128xf32> to vector<2x128xf32>
    %86 = vector.shape_cast %83 : vector<2x128xf32> to vector<1x1x2x128xf32>
    tpu.vector_store %arg7[%c0_41, %c1_42, %c0_43, %c0_44], %86 {strides = array<i32>} : memref<1x9x2x128xf32, #tpu.memory_space<vmem>>, vector<1x1x2x128xf32>,
    %c0_45 = arith.constant 0 : index
    %c2_46 = arith.constant 2 : index
    %c0_47 = arith.constant 0 : index
    %c0_48 = arith.constant 0 : index
    %87 = vector.load %arg7[%c0_45, %c2_46, %c0_47, %c0_48] : memref<1x9x2x128xf32, #tpu.memory_space<vmem>>, vector<1x1x2x128xf32>
    %88 = vector.shape_cast %87 : vector<1x1x2x128xf32> to vector<2x128xf32>
    %89 = arith.mulf %32, %44 : vector<2x128xf32>
    %90 = arith.addf %88, %89 : vector<2x128xf32>
    %c0_49 = arith.constant 0 : index
    %c2_50 = arith.constant 2 : index
    %c0_51 = arith.constant 0 : index
    %c0_52 = arith.constant 0 : index
    %91 = vector.load %arg7[%c0_49, %c2_50, %c0_51, %c0_52] : memref<1x9x2x128xf32, #tpu.memory_space<vmem>>, vector<1x1x2x128xf32>
    %92 = vector.shape_cast %91 : vector<1x1x2x128xf32> to vector<2x128xf32>
    %93 = vector.shape_cast %90 : vector<2x128xf32> to vector<1x1x2x128xf32>
    tpu.vector_store %arg7[%c0_49, %c2_50, %c0_51, %c0_52], %93 {strides = array<i32>} : memref<1x9x2x128xf32, #tpu.memory_space<vmem>>, vector<1x1x2x128xf32>,
    %c0_53 = arith.constant 0 : index
    %c3 = arith.constant 3 : index
    %c0_54 = arith.constant 0 : index
    %c0_55 = arith.constant 0 : index
    %94 = vector.load %arg7[%c0_53, %c3, %c0_54, %c0_55] : memref<1x9x2x128xf32, #tpu.memory_space<vmem>>, vector<1x1x2x128xf32>
    %95 = vector.shape_cast %94 : vector<1x1x2x128xf32> to vector<2x128xf32>
    %96 = arith.addf %30, %36 : vector<2x128xf32>
    %97 = arith.addf %95, %96 : vector<2x128xf32>
    %c0_56 = arith.constant 0 : index
    %c3_57 = arith.constant 3 : index
    %c0_58 = arith.constant 0 : index
    %c0_59 = arith.constant 0 : index
    %98 = vector.load %arg7[%c0_56, %c3_57, %c0_58, %c0_59] : memref<1x9x2x128xf32, #tpu.memory_space<vmem>>, vector<1x1x2x128xf32>
    %99 = vector.shape_cast %98 : vector<1x1x2x128xf32> to vector<2x128xf32>
    %100 = vector.shape_cast %97 : vector<2x128xf32> to vector<1x1x2x128xf32>
    tpu.vector_store %arg7[%c0_56, %c3_57, %c0_58, %c0_59], %100 {strides = array<i32>} : memref<1x9x2x128xf32, #tpu.memory_space<vmem>>, vector<1x1x2x128xf32>,
    %c0_60 = arith.constant 0 : index
    %c4 = arith.constant 4 : index
    %c0_61 = arith.constant 0 : index
    %c0_62 = arith.constant 0 : index
    %101 = vector.load %arg7[%c0_60, %c4, %c0_61, %c0_62] : memref<1x9x2x128xf32, #tpu.memory_space<vmem>>, vector<1x1x2x128xf32>
    %102 = vector.shape_cast %101 : vector<1x1x2x128xf32> to vector<2x128xf32>
    %103 = arith.addf %31, %40 : vector<2x128xf32>
    %104 = arith.addf %102, %103 : vector<2x128xf32>
    %c0_63 = arith.constant 0 : index
    %c4_64 = arith.constant 4 : index
    %c0_65 = arith.constant 0 : index
    %c0_66 = arith.constant 0 : index
    %105 = vector.load %arg7[%c0_63, %c4_64, %c0_65, %c0_66] : memref<1x9x2x128xf32, #tpu.memory_space<vmem>>, vector<1x1x2x128xf32>
    %106 = vector.shape_cast %105 : vector<1x1x2x128xf32> to vector<2x128xf32>
    %107 = vector.shape_cast %104 : vector<2x128xf32> to vector<1x1x2x128xf32>
    tpu.vector_store %arg7[%c0_63, %c4_64, %c0_65, %c0_66], %107 {strides = array<i32>} : memref<1x9x2x128xf32, #tpu.memory_space<vmem>>, vector<1x1x2x128xf32>,
    %c0_67 = arith.constant 0 : index
    %c5 = arith.constant 5 : index
    %c0_68 = arith.constant 0 : index
    %c0_69 = arith.constant 0 : index
    %108 = vector.load %arg7[%c0_67, %c5, %c0_68, %c0_69] : memref<1x9x2x128xf32, #tpu.memory_space<vmem>>, vector<1x1x2x128xf32>
    %109 = vector.shape_cast %108 : vector<1x1x2x128xf32> to vector<2x128xf32>
    %110 = arith.addf %32, %44 : vector<2x128xf32>
    %111 = arith.addf %109, %110 : vector<2x128xf32>
    %c0_70 = arith.constant 0 : index
    %c5_71 = arith.constant 5 : index
    %c0_72 = arith.constant 0 : index
    %c0_73 = arith.constant 0 : index
    %112 = vector.load %arg7[%c0_70, %c5_71, %c0_72, %c0_73] : memref<1x9x2x128xf32, #tpu.memory_space<vmem>>, vector<1x1x2x128xf32>
    %113 = vector.shape_cast %112 : vector<1x1x2x128xf32> to vector<2x128xf32>
    %114 = vector.shape_cast %111 : vector<2x128xf32> to vector<1x1x2x128xf32>
    tpu.vector_store %arg7[%c0_70, %c5_71, %c0_72, %c0_73], %114 {strides = array<i32>} : memref<1x9x2x128xf32, #tpu.memory_space<vmem>>, vector<1x1x2x128xf32>,
    %c0_74 = arith.constant 0 : index
    %c6 = arith.constant 6 : index
    %c0_75 = arith.constant 0 : index
    %c0_76 = arith.constant 0 : index
    %115 = vector.load %arg7[%c0_74, %c6, %c0_75, %c0_76] : memref<1x9x2x128xf32, #tpu.memory_space<vmem>>, vector<1x1x2x128xf32>
    %116 = vector.shape_cast %115 : vector<1x1x2x128xf32> to vector<2x128xf32>
    %117 = arith.addf %116, %70 : vector<2x128xf32>
    %c0_77 = arith.constant 0 : index
    %c6_78 = arith.constant 6 : index
    %c0_79 = arith.constant 0 : index
    %c0_80 = arith.constant 0 : index
    %118 = vector.load %arg7[%c0_77, %c6_78, %c0_79, %c0_80] : memref<1x9x2x128xf32, #tpu.memory_space<vmem>>, vector<1x1x2x128xf32>
    %119 = vector.shape_cast %118 : vector<1x1x2x128xf32> to vector<2x128xf32>
    %120 = vector.shape_cast %117 : vector<2x128xf32> to vector<1x1x2x128xf32>
    tpu.vector_store %arg7[%c0_77, %c6_78, %c0_79, %c0_80], %120 {strides = array<i32>} : memref<1x9x2x128xf32, #tpu.memory_space<vmem>>, vector<1x1x2x128xf32>,
    %c0_81 = arith.constant 0 : index
    %c7 = arith.constant 7 : index
    %c0_82 = arith.constant 0 : index
    %c0_83 = arith.constant 0 : index
    %121 = vector.load %arg7[%c0_81, %c7, %c0_82, %c0_83] : memref<1x9x2x128xf32, #tpu.memory_space<vmem>>, vector<1x1x2x128xf32>
    %122 = vector.shape_cast %121 : vector<1x1x2x128xf32> to vector<2x128xf32>
    %123 = arith.addf %122, %49 : vector<2x128xf32>
    %c0_84 = arith.constant 0 : index
    %c7_85 = arith.constant 7 : index
    %c0_86 = arith.constant 0 : index
    %c0_87 = arith.constant 0 : index
    %124 = vector.load %arg7[%c0_84, %c7_85, %c0_86, %c0_87] : memref<1x9x2x128xf32, #tpu.memory_space<vmem>>, vector<1x1x2x128xf32>
    %125 = vector.shape_cast %124 : vector<1x1x2x128xf32> to vector<2x128xf32>
    %126 = vector.shape_cast %123 : vector<2x128xf32> to vector<1x1x2x128xf32>
    tpu.vector_store %arg7[%c0_84, %c7_85, %c0_86, %c0_87], %126 {strides = array<i32>} : memref<1x9x2x128xf32, #tpu.memory_space<vmem>>, vector<1x1x2x128xf32>,
    %c0_88 = arith.constant 0 : index
    %c8 = arith.constant 8 : index
    %c0_89 = arith.constant 0 : index
    %c0_90 = arith.constant 0 : index
    %127 = vector.load %arg7[%c0_88, %c8, %c0_89, %c0_90] : memref<1x9x2x128xf32, #tpu.memory_space<vmem>>, vector<1x1x2x128xf32>
    %128 = vector.shape_cast %127 : vector<1x1x2x128xf32> to vector<2x128xf32>
    %129 = arith.addf %128, %72 : vector<2x128xf32>
    %c0_91 = arith.constant 0 : index
    %c8_92 = arith.constant 8 : index
    %c0_93 = arith.constant 0 : index
    %c0_94 = arith.constant 0 : index
    %130 = vector.load %arg7[%c0_91, %c8_92, %c0_93, %c0_94] : memref<1x9x2x128xf32, #tpu.memory_space<vmem>>, vector<1x1x2x128xf32>
    %131 = vector.shape_cast %130 : vector<1x1x2x128xf32> to vector<2x128xf32>
    %132 = vector.shape_cast %129 : vector<2x128xf32> to vector<1x1x2x128xf32>
    tpu.vector_store %arg7[%c0_91, %c8_92, %c0_93, %c0_94], %132 {strides = array<i32>} : memref<1x9x2x128xf32, #tpu.memory_space<vmem>>, vector<1x1x2x128xf32>,
    return
  }
  func.func @transform_0(%arg0: i32, %arg1: i32, %arg2: i32) -> (i32, i32, i32, i32) {
    %c1_i32 = arith.constant 1 : i32
    %0 = arith.muli %arg0, %c1_i32 : i32
    %1 = arith.addi %0, %arg2 : i32
    %c0_i32 = arith.constant 0 : i32
    %c0_i32_0 = arith.constant 0 : i32
    %c0_i32_1 = arith.constant 0 : i32
    return %arg1, %c0_i32, %1, %c0_i32_0 : i32, i32, i32, i32
  }
  func.func @transform_1(%arg0: i32, %arg1: i32, %arg2: i32) -> (i32, i32, i32) {
    %c1_i32 = arith.constant 1 : i32
    %0 = arith.muli %arg0, %c1_i32 : i32
    %1 = arith.addi %0, %arg2 : i32
    %c0_i32 = arith.constant 0 : i32
    %c0_i32_0 = arith.constant 0 : i32
    return %arg1, %1, %c0_i32 : i32, i32, i32
  }
  func.func @transform_2(%arg0: i32, %arg1: i32, %arg2: i32) -> (i32, i32, i32) {
    %c1_i32 = arith.constant 1 : i32
    %0 = arith.muli %arg0, %c1_i32 : i32
    %1 = arith.addi %0, %arg2 : i32
    %c0_i32 = arith.constant 0 : i32
    %c0_i32_0 = arith.constant 0 : i32
    return %arg1, %1, %c0_i32 : i32, i32, i32
  }
  func.func @transform_3(%arg0: i32, %arg1: i32, %arg2: i32) -> (i32, i32, i32) {
    %c1_i32 = arith.constant 1 : i32
    %0 = arith.muli %arg0, %c1_i32 : i32
    %1 = arith.addi %0, %arg2 : i32
    %c0_i32 = arith.constant 0 : i32
    %c0_i32_0 = arith.constant 0 : i32
    return %arg1, %1, %c0_i32 : i32, i32, i32
  }
  func.func @transform_4(%arg0: i32, %arg1: i32, %arg2: i32) -> (i32, i32, i32, i32) {
    %c0_i32 = arith.constant 0 : i32
    %c0_i32_0 = arith.constant 0 : i32
    %c0_i32_1 = arith.constant 0 : i32
    %c0_i32_2 = arith.constant 0 : i32
    return %arg0, %c0_i32, %c0_i32_0, %c0_i32_1 : i32, i32, i32, i32
  }
}

</mosaic_0001>

<llo_original>
// kernel: combined_loss.1
$region0: #{combined_loss.1}
  #allocation0 [shape = 'u32[]', space=smem, size = 0x4, offset = 0x4, fixed_abs, tag = 'smem constant byte address 0x4 - core index']
  #allocation1 [shape = 'u32[144,128]{1,0:T(1,128)}', space=vmem, size = 0x12000, scoped, tag = 'internal scratch']
  %s0 = inlined_call_operand.vmem [shape: f32[2,3,2,128], index: 0, kind: input, shape index: {}]
  %s1 = inlined_call_operand.vmem [shape: s32[2,2,128], index: 1, kind: input, shape index: {}]
  %s2 = inlined_call_operand.vmem [shape: f32[2,2,128], index: 2, kind: input, shape index: {}]
  %s3 = inlined_call_operand.vmem [shape: f32[2,2,128], index: 3, kind: input, shape index: {}]
  %s4 = inlined_call_operand.vmem [shape: f32[1,9,2,128], index: 4, kind: output, shape index: {}]
  %s5 = sld [smem:[#allocation0]]
  $region53: #{combined_loss.1} parent=0
    _
  %s7 = ssub.s32 1, %s5
  %s8 = scalar_select 0, %s7, %s5
  loop: start=0, step=1, limit=4
  $region2: #{combined_loss.1} parent=0 // loop_pre_header
    _
  $region3: #{combined_loss.1} parent=0 // loop_header
    %s10 = sphi 0, %s14
    %p11 = scmp.ge.s32.totalorder %s10, 4
    %s17 = sphi 0, %s36
    %s18 = sphi 0, %s32
    %s19 = sphi 0, %s28
    %s20 = sphi 0, %s17
    %s21 = sphi 0, %s18
    %s22 = sphi 0, %s19
    %s23 = sphi 0, %s20
    %s24 = sphi 0, %s21
    %s25 = sphi 0, %s22
    %s43 = sphi 0, %s45
    %s46 = sphi 0, %s43
    %s47 = sphi 0, %s46
    %s63 = sphi 0, %s47
    %s73 = sphi 0, %s75
    %s76 = sphi 0, %s73
    %s77 = sphi 0, %s76
    %s93 = sphi 0, %s77
    %s103 = sphi 0, %s105
    %s106 = sphi 0, %s103
    %s107 = sphi 0, %s106
    %s123 = sphi 0, %s107
    %s133 = sphi 0, %s135
    %s136 = sphi 0, %s133
    %s137 = sphi 0, %s136
    %s153 = sphi 0, %s137
    %s159 = sphi 0, %s161
    %s162 = sphi 0, %s159
    %s163 = sphi 0, %s162
    %s179 = sphi 0, %s163
  $region4: #{combined_loss.1} parent=0 // loop_header_branch
    %13 = sbr.rel (%p11) target = $region8
  $region5: #{combined_loss.1} parent=0 // loop_body
    %s15 = ssub.s32 %s10, 1
    %s16 = ssub.s32 %s10, 2
    %s26 = sadd.s32 1, %s19
    %p27 = scmp.ge.s32.totalorder %s26, 1
    %s28 = scalar_select %p27, 0, %s26
    %s29 = sadd.s32 1, %s18
    %s30 = scalar_select %p27, %s29, %s18
    %p31 = scmp.ge.s32.totalorder %s30, 2
    %s32 = scalar_select %p31, 0, %s30
    %s33 = sadd.s32 1, %s17
    %s34 = scalar_select %p31, %s33, %s17
    %p35 = scmp.ge.s32.totalorder %s34, 1
    %s36 = scalar_select %p35, 0, %s34
    %s37 = sadd.s32 %s17, %s19
    %s38 = sadd.s32 %s36, %s28
    %s39 = ssub.s32 %s18, %s32
    %s40 = ssub.s32 %s37, %s38
    %s41 = sor.u32 %s39, %s40
    %p42 = scmp.eq.s32.totalorder %s41, 0
    %s44 = sadd.s32 %s43, 1
    %s45 = scalar_select %p42, %s43, %s44
    %p48 = pneg %p42
    %p49 = scmp.eq.s32.totalorder %s10, 1
    %p50 = por %p48, %p49
    %p51 = scmp.ne.s32.totalorder %s43, %s46
    %p52 = scmp.eq.s32.totalorder %s10, 0
    %p53 = por %p51, %p52
    %p54 = scmp.ne.s32.totalorder %s43, %s46
    %p55 = scmp.eq.s32.totalorder %s15, 1
    %p56 = por %p54, %p55
    %p57 = scmp.ne.s32.totalorder %s46, %s47
    %p58 = scmp.eq.s32.totalorder %s15, 0
    %p59 = por %p57, %p58
    %p60 = scmp.ne.s32.totalorder %s46, %s47
    %p61 = scmp.eq.s32.totalorder %s16, 1
    %p62 = por %p60, %p61
    %p64 = scmp.ne.s32.totalorder %s47, %s63
    %p65 = scmp.eq.s32.totalorder %s16, 0
    %p66 = por %p64, %p65
    %s67 = sadd.s32 %s17, %s19
    %s68 = sadd.s32 %s36, %s28
    %s69 = ssub.s32 %s18, %s32
    %s70 = ssub.s32 %s67, %s68
    %s71 = sor.u32 %s69, %s70
    %p72 = scmp.eq.s32.totalorder %s71, 0
    %s74 = sadd.s32 %s73, 1
    %s75 = scalar_select %p72, %s73, %s74
    %p78 = pneg %p72
    %p79 = scmp.eq.s32.totalorder %s10, 1
    %p80 = por %p78, %p79
    %p81 = scmp.ne.s32.totalorder %s73, %s76
    %p82 = scmp.eq.s32.totalorder %s10, 0
    %p83 = por %p81, %p82
    %p84 = scmp.ne.s32.totalorder %s73, %s76
    %p85 = scmp.eq.s32.totalorder %s15, 1
    %p86 = por %p84, %p85
    %p87 = scmp.ne.s32.totalorder %s76, %s77
    %p88 = scmp.eq.s32.totalorder %s15, 0
    %p89 = por %p87, %p88
    %p90 = scmp.ne.s32.totalorder %s76, %s77
    %p91 = scmp.eq.s32.totalorder %s16, 1
    %p92 = por %p90, %p91
    %p94 = scmp.ne.s32.totalorder %s77, %s93
    %p95 = scmp.eq.s32.totalorder %s16, 0
    %p96 = por %p94, %p95
    %s97 = sadd.s32 %s17, %s19
    %s98 = sadd.s32 %s36, %s28
    %s99 = ssub.s32 %s18, %s32
    %s100 = ssub.s32 %s97, %s98
    %s101 = sor.u32 %s99, %s100
    %p102 = scmp.eq.s32.totalorder %s101, 0
    %s104 = sadd.s32 %s103, 1
    %s105 = scalar_select %p102, %s103, %s104
    %p108 = pneg %p102
    %p109 = scmp.eq.s32.totalorder %s10, 1
    %p110 = por %p108, %p109
    %p111 = scmp.ne.s32.totalorder %s103, %s106
    %p112 = scmp.eq.s32.totalorder %s10, 0
    %p113 = por %p111, %p112
    %p114 = scmp.ne.s32.totalorder %s103, %s106
    %p115 = scmp.eq.s32.totalorder %s15, 1
    %p116 = por %p114, %p115
    %p117 = scmp.ne.s32.totalorder %s106, %s107
    %p118 = scmp.eq.s32.totalorder %s15, 0
    %p119 = por %p117, %p118
    %p120 = scmp.ne.s32.totalorder %s106, %s107
    %p121 = scmp.eq.s32.totalorder %s16, 1
    %p122 = por %p120, %p121
    %p124 = scmp.ne.s32.totalorder %s107, %s123
    %p125 = scmp.eq.s32.totalorder %s16, 0
    %p126 = por %p124, %p125
    %s127 = sadd.s32 %s17, %s19
    %s128 = sadd.s32 %s36, %s28
    %s129 = ssub.s32 %s18, %s32
    %s130 = ssub.s32 %s127, %s128
    %s131 = sor.u32 %s129, %s130
    %p132 = scmp.eq.s32.totalorder %s131, 0
    %s134 = sadd.s32 %s133, 1
    %s135 = scalar_select %p132, %s133, %s134
    %p138 = pneg %p132
    %p139 = scmp.eq.s32.totalorder %s10, 1
    %p140 = por %p138, %p139
    %p141 = scmp.ne.s32.totalorder %s133, %s136
    %p142 = scmp.eq.s32.totalorder %s10, 0
    %p143 = por %p141, %p142
    %p144 = scmp.ne.s32.totalorder %s133, %s136
    %p145 = scmp.eq.s32.totalorder %s15, 1
    %p146 = por %p144, %p145
    %p147 = scmp.ne.s32.totalorder %s136, %s137
    %p148 = scmp.eq.s32.totalorder %s15, 0
    %p149 = por %p147, %p148
    %p150 = scmp.ne.s32.totalorder %s136, %s137
    %p151 = scmp.eq.s32.totalorder %s16, 1
    %p152 = por %p150, %p151
    %p154 = scmp.ne.s32.totalorder %s137, %s153
    %p155 = scmp.eq.s32.totalorder %s16, 0
    %p156 = por %p154, %p155
    %s157 = ssub.s32 %s17, %s36
    %p158 = scmp.eq.s32.totalorder %s157, 0
    %s160 = sadd.s32 %s159, 1
    %s161 = scalar_select %p158, %s159, %s160
    %p164 = pneg %p158
    %p165 = scmp.eq.s32.totalorder %s10, 1
    %p166 = por %p164, %p165
    %p167 = scmp.ne.s32.totalorder %s159, %s162
    %p168 = scmp.eq.s32.totalorder %s10, 0
    %p169 = por %p167, %p168
    %p170 = scmp.ne.s32.totalorder %s159, %s162
    %p171 = scmp.eq.s32.totalorder %s15, 1
    %p172 = por %p170, %p171
    %p173 = scmp.ne.s32.totalorder %s162, %s163
    %p174 = scmp.eq.s32.totalorder %s15, 0
    %p175 = por %p173, %p174
    %p176 = scmp.ne.s32.totalorder %s162, %s163
    %p177 = scmp.eq.s32.totalorder %s16, 1
    %p178 = por %p176, %p177
    %p180 = scmp.ne.s32.totalorder %s163, %s179
    %p181 = scmp.eq.s32.totalorder %s16, 0
    %p182 = por %p180, %p181
    %p183 = scmp.le.s32.totalorder 1, %s10
    %p184 = scmp.lt.s32.totalorder %s10, 3
    %p185 = pnand %p183, %p184
    %p186 = pneg %p185
    // Predicated region
    $region9: #{combined_loss.1} parent=5 // pred_check
      _
    $region10: #{combined_loss.1} parent=5 // pred_check_branch
      %188 = sbr.rel (%p185) target = $region12
    $region11: #{combined_loss.1} parent=5 // pred_region
      %s189 = ssub.s32 %s10, 1
    $region12: #{combined_loss.1} parent=5 // pred_fallthru
      _
    %p190 = scmp.lt.s32.totalorder %s10, 2
    // Predicated region
    $region13: #{combined_loss.1} parent=5 // pred_check
      %p191 = pneg %p190
    $region14: #{combined_loss.1} parent=5 // pred_check_branch
      %193 = sbr.rel (%p191) target = $region16
    $region15: #{combined_loss.1} parent=5 // pred_region
      // Predicated region
      $region17: #{combined_loss.1} parent=15 // pred_check
        %p194 = pneg %p53
      $region18: #{combined_loss.1} parent=15 // pred_check_branch
        %196 = sbr.rel (%p194) target = $region20
      $region19: #{combined_loss.1} parent=15 // pred_region
        %s197 = sadd.s32 %s17, %s19
        %p198 = scmp.lt.s32.totalorder %s18, 1
        %s199 = scalar_select %p198, %s18, 1
        %p200 = scmp.lt.s32.totalorder %s197, 0
        %s201 = scalar_select %p200, %s197, 0
        %s202 = smul.addr %s199, 3
        %s203 = sadd.s32 %s201, %s202
        %s204 = smul.addr %s203, 2
        %s205 = scalar_lea.vmem %s0, %s204
        %s206 = sadd.s32 %s17, %s19
      $region20: #{combined_loss.1} parent=15 // pred_fallthru
        _
      // Predicated region
      $region21: #{combined_loss.1} parent=15 // pred_check
        %p207 = pneg %p83
      $region22: #{combined_loss.1} parent=15 // pred_check_branch
        %209 = sbr.rel (%p207) target = $region24
      $region23: #{combined_loss.1} parent=15 // pred_region
        %s210 = sadd.s32 %s17, %s19
        %p211 = scmp.lt.s32.totalorder %s18, 1
        %s212 = scalar_select %p211, %s18, 1
        %p213 = scmp.lt.s32.totalorder %s210, 0
        %s214 = scalar_select %p213, %s210, 0
        %s215 = sadd.s32 %s214, %s212
        %s216 = smul.addr %s215, 2
        %s217 = scalar_lea.vmem %s1, %s216
        %s218 = sadd.s32 %s17, %s19
      $region24: #{combined_loss.1} parent=15 // pred_fallthru
        _
      // Predicated region
      $region25: #{combined_loss.1} parent=15 // pred_check
        %p219 = pneg %p113
      $region26: #{combined_loss.1} parent=15 // pred_check_branch
        %221 = sbr.rel (%p219) target = $region28
      $region27: #{combined_loss.1} parent=15 // pred_region
        %s222 = sadd.s32 %s17, %s19
        %p223 = scmp.lt.s32.totalorder %s18, 1
        %s224 = scalar_select %p223, %s18, 1
        %p225 = scmp.lt.s32.totalorder %s222, 0
        %s226 = scalar_select %p225, %s222, 0
        %s227 = sadd.s32 %s226, %s224
        %s228 = smul.addr %s227, 2
        %s229 = scalar_lea.vmem %s2, %s228
        %s230 = sadd.s32 %s17, %s19
      $region28: #{combined_loss.1} parent=15 // pred_fallthru
        _
      // Predicated region
      $region29: #{combined_loss.1} parent=15 // pred_check
        %p231 = pneg %p143
      $region30: #{combined_loss.1} parent=15 // pred_check_branch
        %233 = sbr.rel (%p231) target = $region32
      $region31: #{combined_loss.1} parent=15 // pred_region
        %s234 = sadd.s32 %s17, %s19
        %p235 = scmp.lt.s32.totalorder %s18, 1
        %s236 = scalar_select %p235, %s18, 1
        %p237 = scmp.lt.s32.totalorder %s234, 0
        %s238 = scalar_select %p237, %s234, 0
        %s239 = sadd.s32 %s238, %s236
        %s240 = smul.addr %s239, 2
        %s241 = scalar_lea.vmem %s3, %s240
        %s242 = sadd.s32 %s17, %s19
      $region32: #{combined_loss.1} parent=15 // pred_fallthru
        _
    $region16: #{combined_loss.1} parent=5 // pred_fallthru
      _
    %p243 = scmp.le.s32.totalorder 1, %s10
    %p244 = scmp.lt.s32.totalorder %s10, 3
    %p245 = pnand %p243, %p244
    %p246 = pneg %p245
    // Predicated region
    $region33: #{combined_loss.1} parent=5 // pred_check
      _
    $region34: #{combined_loss.1} parent=5 // pred_check_branch
      %248 = sbr.rel (%p245) target = $region36
    $region35: #{combined_loss.1} parent=5 // pred_region
      %s249 = ssub.s32 %s10, 1
      %s250 = sadd.s32 %s20, %s22
      %p251 = scmp.lt.s32.totalorder %s21, 1
      %s252 = scalar_select %p251, %s21, 1
      %p253 = scmp.lt.s32.totalorder %s250, 0
      %s254 = scalar_select %p253, %s250, 0
      %s255 = smul.addr %s252, 3
      %s256 = sadd.s32 %s254, %s255
      %s257 = smul.addr %s256, 2
      %s258 = scalar_lea.vmem %s0, %s257
      %p259 = pneg %p59
      %p260 = pneg %p56
      %s261 = sadd.s32 %s20, %s22
      %p262 = scmp.lt.s32.totalorder %s21, 1
      %s263 = scalar_select %p262, %s21, 1
      %p264 = scmp.lt.s32.totalorder %s261, 0
      %s265 = scalar_select %p264, %s261, 0
      %s266 = sadd.s32 %s265, %s263
      %s267 = smul.addr %s266, 2
      %s268 = scalar_lea.vmem %s1, %s267
      %p269 = pneg %p89
      %p270 = pneg %p86
      %s271 = sadd.s32 %s20, %s22
      %p272 = scmp.lt.s32.totalorder %s21, 1
      %s273 = scalar_select %p272, %s21, 1
      %p274 = scmp.lt.s32.totalorder %s271, 0
      %s275 = scalar_select %p274, %s271, 0
      %s276 = sadd.s32 %s275, %s273
      %s277 = smul.addr %s276, 2
      %s278 = scalar_lea.vmem %s2, %s277
      %p279 = pneg %p119
      %p280 = pneg %p116
      %s281 = sadd.s32 %s20, %s22
      %p282 = scmp.lt.s32.totalorder %s21, 1
      %s283 = scalar_select %p282, %s21, 1
      %p284 = scmp.lt.s32.totalorder %s281, 0
      %s285 = scalar_select %p284, %s281, 0
      %s286 = sadd.s32 %s285, %s283
      %s287 = smul.addr %s286, 2
      %s288 = scalar_lea.vmem %s3, %s287
      %p289 = pneg %p149
      %p290 = pneg %p146
      %p291 = pneg %p175
      %p292 = pneg %p172
      %p293 = scmp.lt.s32.totalorder %s20, 0
      %s294 = scalar_select %p293, %s20, 0
      %s295 = smul.addr %s294, 9
      %s296 = smul.addr %s295, 2
      %s297 = scalar_lea.vmem %s4, %s296
      %s298 = sadd.s32 %s20, %s22
      %p299 = scmp.lt.s32.totalorder %s21, 1
      %s300 = scalar_select %p299, %s21, 1
      %p301 = scmp.lt.s32.totalorder %s298, 0
      %s302 = scalar_select %p301, %s298, 0
      %s303 = smul.addr %s300, 3
      %s304 = sadd.s32 %s302, %s303
      %s305 = smul.addr %s304, 2
      %s306 = scalar_lea.vmem %s0, %s305
      %s307 = sadd.s32 %s20, %s22
      %s308 = sadd.s32 %s20, %s22
      %p309 = scmp.lt.s32.totalorder %s21, 1
      %s310 = scalar_select %p309, %s21, 1
      %p311 = scmp.lt.s32.totalorder %s308, 0
      %s312 = scalar_select %p311, %s308, 0
      %s313 = sadd.s32 %s312, %s310
      %s314 = smul.addr %s313, 2
      %s315 = scalar_lea.vmem %s1, %s314
      %s316 = sadd.s32 %s20, %s22
      %s317 = sadd.s32 %s20, %s22
      %p318 = scmp.lt.s32.totalorder %s21, 1
      %s319 = scalar_select %p318, %s21, 1
      %p320 = scmp.lt.s32.totalorder %s317, 0
      %s321 = scalar_select %p320, %s317, 0
      %s322 = sadd.s32 %s321, %s319
      %s323 = smul.addr %s322, 2
      %s324 = scalar_lea.vmem %s2, %s323
      %s325 = sadd.s32 %s20, %s22
      %s326 = sadd.s32 %s20, %s22
      %p327 = scmp.lt.s32.totalorder %s21, 1
      %s328 = scalar_select %p327, %s21, 1
      %p329 = scmp.lt.s32.totalorder %s326, 0
      %s330 = scalar_select %p329, %s326, 0
      %s331 = sadd.s32 %s330, %s328
      %s332 = smul.addr %s331, 2
      %s333 = scalar_lea.vmem %s3, %s332
      %s334 = sadd.s32 %s20, %s22
      %p335 = scmp.lt.s32.totalorder %s20, 0
      %s336 = scalar_select %p335, %s20, 0
      %s337 = smul.addr %s336, 9
      %s338 = smul.addr %s337, 2
      %s339 = scalar_lea.vmem %s4, %s338
      %p340 = scmp.eq.s32.totalorder %s21, 0
      %p341 = scmp.eq.s32.totalorder %s22, 0
      %p342 = pnand %p340, %p341
      %p343 = pneg %p342
      // Predicated region
      $region37: #{combined_loss.1} parent=35 // pred_check
        _
      $region38: #{combined_loss.1} parent=35 // pred_check_branch
        %345 = sbr.rel (%p342) target = $region40
      $region39: #{combined_loss.1} parent=35 // pred_region
        %346 = vst [vmem:[%s339] sm:$0x3] 0.0
        %347 = vst [vmem:[%s339 + $0x2] sm:$0x3] 0.0
        %348 = vst [vmem:[%s339 + $0x4] sm:$0x3] 0.0
        %349 = vst [vmem:[%s339 + $0x6] sm:$0x3] 0.0
        %350 = vst [vmem:[%s339 + $0x8] sm:$0x3] 0.0
        %351 = vst [vmem:[%s339 + $0xa] sm:$0x3] 0.0
        %352 = vst [vmem:[%s339 + $0xc] sm:$0x3] 0.0
        %353 = vst [vmem:[%s339 + $0xe] sm:$0x3] 0.0
        %354 = vst [vmem:[%s339 + $0x10] sm:$0x3] 0.0
      $region40: #{combined_loss.1} parent=35 // pred_fallthru
        _
      %v355 = vld [vmem:[%s306] sm:$0x3]
      %s356 = scalar_lea.vmem %s306, 2
      %v357 = vld [vmem:[%s356] sm:$0x3]
      %s358 = scalar_lea.vmem %s306, 4
      %v359 = vld [vmem:[%s358] sm:$0x3]
      %v360 = vld [vmem:[%s315] sm:$0x3]
      %v361 = vld [vmem:[%s324] sm:$0x3]
      %v362 = vld [vmem:[%s333] sm:$0x3]
      %v363 = vmax.f32 %v355, %v357
      %v364 = vmax.f32 %v363, %v359
      %v365 = vsub.f32 %v355, %v364
      %v366 = vsub.f32 %v357, %v364
      %v367 = vsub.f32 %v359, %v364
      %v368 = vmul.f32 %v365, 1.442695
      %v369 = vpow.pop %v368
      %v370 = vmul.f32 %v366, 1.442695
      %v371 = vpow.pop %v370
      %v372 = vmul.f32 %v367, 1.442695
      %v373 = vpow.pop %v372
      %v374 = vadd.f32 %v369, %v371
      %v375 = vadd.f32 %v374, %v373
      %v376 = vlog2.pop %v375
      %v377 = vmul.f32 %v376, 0.6931472
      %v378 = vrcp.pop %v375
      %v379 = vmul.f32 1.0, %v378
      %v380 = vmul.f32 %v369, %v379
      %v381 = vmul.f32 %v371, %v379
      %v382 = vmul.f32 %v373, %v379
      %vm383 = vcmp.eq.s32.totalorder %v360, 0
      %v384 = vsel %vm383, 1, 0
      %v385 = vcvt.s32.f32 %v384
      %vm386 = vcmp.eq.s32.totalorder %v360, 1
      %v387 = vsel %vm386, 1, 0
      %v388 = vcvt.s32.f32 %v387
      %vm389 = vcmp.eq.s32.totalorder %v360, 2
      %v390 = vsel %vm389, 1, 0
      %v391 = vcvt.s32.f32 %v390
      %v392 = vsel %vm383, 1.0, 5.0
      %v393 = vmul.f32 %v385, %v365
      %v394 = vmul.f32 %v388, %v366
      %v395 = vadd.f32 %v393, %v394
      %v396 = vmul.f32 %v391, %v367
      %v397 = vadd.f32 %v395, %v396
      %v398 = vsub.f32 %v377, %v397
      %v399 = vmul.f32 %v392, %v398
      %v400 = vmul.f32 %v377, 11.0
      %v401 = vadd.f32 %v366, %v367
      %v402 = vmul.f32 %v401, 5.0
      %v403 = vadd.f32 %v365, %v402
      %v404 = vsub.f32 %v400, %v403
      %v405 = vmul.f32 %v399, 0.9
      %v406 = vmul.f32 %v404, 0.033333335
      %v407 = vadd.f32 %v405, %v406
      %v408 = vsub.f32 %v361, %v362
      %v409 = vand.u32 2147483647, %v408
      %v410 = vld [vmem:[%s339] sm:$0x3]
      %v411 = vmul.f32 %v380, %v385
      %v412 = vadd.f32 %v410, %v411
      %413 = vst [vmem:[%s339] sm:$0x3] %v412
      %s414 = scalar_lea.vmem %s339, 2
      %v415 = vld [vmem:[%s414] sm:$0x3]
      %v416 = vmul.f32 %v381, %v388
      %v417 = vadd.f32 %v415, %v416
      %418 = vst [vmem:[%s414] sm:$0x3] %v417
      %s419 = scalar_lea.vmem %s339, 4
      %v420 = vld [vmem:[%s419] sm:$0x3]
      %v421 = vmul.f32 %v382, %v391
      %v422 = vadd.f32 %v420, %v421
      %423 = vst [vmem:[%s419] sm:$0x3] %v422
      %s424 = scalar_lea.vmem %s339, 6
      %v425 = vld [vmem:[%s424] sm:$0x3]
      %v426 = vadd.f32 %v380, %v385
      %v427 = vadd.f32 %v425, %v426
      %428 = vst [vmem:[%s424] sm:$0x3] %v427
      %s429 = scalar_lea.vmem %s339, 8
      %v430 = vld [vmem:[%s429] sm:$0x3]
      %v431 = vadd.f32 %v381, %v388
      %v432 = vadd.f32 %v430, %v431
      %433 = vst [vmem:[%s429] sm:$0x3] %v432
      %s434 = scalar_lea.vmem %s339, 10
      %v435 = vld [vmem:[%s434] sm:$0x3]
      %v436 = vadd.f32 %v382, %v391
      %v437 = vadd.f32 %v435, %v436
      %438 = vst [vmem:[%s434] sm:$0x3] %v437
      %s439 = scalar_lea.vmem %s339, 12
      %v440 = vld [vmem:[%s439] sm:$0x3]
      %v441 = vadd.f32 %v440, %v407
      %442 = vst [vmem:[%s439] sm:$0x3] %v441
      %s443 = scalar_lea.vmem %s339, 14
      %v444 = vld [vmem:[%s443] sm:$0x3]
      %v445 = vadd.f32 %v444, %v392
      %446 = vst [vmem:[%s443] sm:$0x3] %v445
      %s447 = scalar_lea.vmem %s339, 16
      %v448 = vld [vmem:[%s447] sm:$0x3]
      %v449 = vadd.f32 %v448, %v409
      %450 = vst [vmem:[%s447] sm:$0x3] %v449
      %p451 = scmp.lt.s32.totalorder %s20, 0
      %s452 = scalar_select %p451, %s20, 0
      %s453 = smul.addr %s452, 9
      %s454 = smul.addr %s453, 2
      %s455 = scalar_lea.vmem %s4, %s454
      // Predicated region
      $region41: #{combined_loss.1} parent=35 // pred_check
        %p456 = pneg %p172
      $region42: #{combined_loss.1} parent=35 // pred_check_branch
        %458 = sbr.rel (%p456) target = $region44
      $region43: #{combined_loss.1} parent=35 // pred_region
        _
      $region44: #{combined_loss.1} parent=35 // pred_fallthru
        _
      // Predicated region
      $region45: #{combined_loss.1} parent=35 // pred_check
        %p459 = pneg %p172
      $region46: #{combined_loss.1} parent=35 // pred_check_branch
        %461 = sbr.rel (%p459) target = $region48
      $region47: #{combined_loss.1} parent=35 // pred_region
        %p462 = scmp.lt.s32.totalorder %s20, 0
        %s463 = scalar_select %p462, %s20, 0
        %s464 = smul.addr %s463, 9
        %s465 = smul.addr %s464, 2
        %s466 = scalar_lea.vmem %s4, %s465
      $region48: #{combined_loss.1} parent=35 // pred_fallthru
        _
    $region36: #{combined_loss.1} parent=5 // pred_fallthru
      _
    %p467 = scmp.le.s32.totalorder 2, %s10
    // Predicated region
    $region49: #{combined_loss.1} parent=5 // pred_check
      %p468 = pneg %p467
    $region50: #{combined_loss.1} parent=5 // pred_check_branch
      %470 = sbr.rel (%p468) target = $region52
    $region51: #{combined_loss.1} parent=5 // pred_region
      %s471 = ssub.s32 %s10, 2
    $region52: #{combined_loss.1} parent=5 // pred_fallthru
      _
  $region6: #{combined_loss.1} parent=0 // loop_footer
    %s14 = sadd.s32 1, %s10
  $region7: #{combined_loss.1} parent=0 // loop_footer_branch
    %9 = sbr.rel target = $region3
  $region8: #{combined_loss.1} parent=0 // loop_exit
    _

</llo_original>
